<compile_context>
chip_gen: v7x
topology: tpu7x:2x2x1
jax: 0.10.0
libtpu: 0.0.40
codegen_flags: <defaults>
</compile_context>

<pallas_src>
import functools

import jax
import jax.numpy as jnp
from jax import lax
from jax.experimental import pallas as pl
from jax.experimental.pallas import tpu as pltpu

_TARGET_TILE_BYTES = 2 * 1024 * 1024      # ~85%+ of HBM roofline per measured sweep
_MAX_LANE_WIDTH = 8192                    # lane-dense width cap for reshaped views


# ---------------------------------------------------------------------------
# Small helpers
# ---------------------------------------------------------------------------
def _vmem_limit_bytes():
    """Generation-aware scoped-VMEM request (v5e/v6e: 128 MiB phys, v7x: 64 MiB)."""
    try:
        cap = int(getattr(pltpu.get_tpu_info(), "vmem_capacity_bytes", 0))
    except Exception:
        cap = 0
    if cap >= 96 * 1024 * 1024:
        return 64 * 1024 * 1024
    if cap > 0:
        return min(48 * 1024 * 1024, (cap * 3) // 4)
    return 48 * 1024 * 1024


def _sublane(itemsize):
    # Sublane packing of the native dtype: f32 -> 8, bf16 -> 16, int8/fp8 -> 32.
    return max(8, 32 // max(1, itemsize))


def _largest_lane_factor(n, cap=_MAX_LANE_WIDTH):
    """Largest multiple-of-128 divisor of n that is <= cap (None if none)."""
    best = None
    c = 128
    top = min(n, cap)
    while c <= top:
        if n % c == 0:
            best = c
        c += 128
    return best


def _round_down(v, m):
    return (v // m) * m


def _cparams(sem, vmem_limit):
    return pltpu.CompilerParams(dimension_semantics=sem, vmem_limit_bytes=vmem_limit)


# ---------------------------------------------------------------------------
# Kernels
# ---------------------------------------------------------------------------
def _resident_kernel(x_ref, o_ref, *, qmax):
    """Whole (B, N) activation in one VMEM block: reduce + fake-quant fused."""
    x = x_ref[...].astype(jnp.float32)
    min_value = jnp.mean(jnp.min(x, axis=1, keepdims=True))
    max_value = jnp.mean(jnp.max(x, axis=1, keepdims=True))
    scale = jnp.maximum((max_value - min_value) / qmax, 1e-8)
    # Divide (not multiply-by-reciprocal) so rounding ties match the PyTorch
    # `.div_(scale)`; the divide is EUP work hidden under the DMA.
    y = jnp.round(jnp.clip((x - min_value) / scale, 0.0, qmax))
    o_ref[...] = (y * scale + min_value).astype(o_ref.dtype)


def _fused_kernel(x_ref, o_ref, rmin_ref, rmax_ref, *, qmax, batch, group, num_tiles):
    """Fused streaming path: 1 HBM read + 1 HBM write.

    Native-dtype (tr, C) input tiles are streamed (double-buffered DMA) and
    cached into the VMEM-resident output block while per-row min/max accumulate
    in scratch.  At the last grid step the quant params are derived in-kernel
    and the cached tiles are fake-quantized in place before the single
    writeback to HBM.
    """
    t = pl.program_id(0)
    tr = x_ref.shape[0]
    total_rows = o_ref.shape[0]

    off = pl.multiple_of(t * tr, tr)
    o_ref[pl.ds(off, tr), :] = x_ref[...]                     # cache native tile
    xf = x_ref[...].astype(jnp.float32)
    rmin_ref[pl.ds(off, tr), :] = jnp.min(xf, axis=1, keepdims=True)
    rmax_ref[pl.ds(off, tr), :] = jnp.max(xf, axis=1, keepdims=True)

    @pl.when(t == num_tiles - 1)
    def _():
        rmin = rmin_ref[...]
        rmax = rmax_ref[...]
        # Per-sample fold: each sample owns `group` consecutive rows.  The
        # mask-based fold is exact even when a row tile straddles samples.
        rid = lax.broadcasted_iota(jnp.int32, (total_rows, 1), 0) // group
        min_acc = jnp.float32(0.0)
        max_acc = jnp.float32(0.0)
        for b in range(batch):                                # static unroll, B small
            min_acc = min_acc + jnp.min(jnp.where(rid == b, rmin, jnp.inf))
            max_acc = max_acc + jnp.max(jnp.where(rid == b, rmax, -jnp.inf))
        min_value = min_acc / jnp.float32(batch)
        max_value = max_acc / jnp.float32(batch)
        scale = jnp.maximum((max_value - min_value) / qmax, 1e-8)

        def body(i, carry):
            o = pl.multiple_of(i * tr, tr)
            xi = o_ref[pl.ds(o, tr), :].astype(jnp.float32)
            y = jnp.round(jnp.clip((xi - min_value) / scale, 0.0, qmax))
            o_ref[pl.ds(o, tr), :] = (y * scale + min_value).astype(o_ref.dtype)
            return carry

        lax.fori_loop(0, num_tiles, body, 0)


def _rowstat_kernel(x_ref, min_ref, max_ref):
    """Pass A (row-reshaped): per-row min/max; fully parallel grid, no carry."""
    x = x_ref[...].astype(jnp.float32)
    min_ref[...] = jnp.min(x, axis=1, keepdims=True)
    max_ref[...] = jnp.max(x, axis=1, keepdims=True)


def _minmax_masked_kernel(x_ref, min_ref, max_ref, *, tn, n_total):
    """Pass A fallback (N % 128 != 0): running per-sample min/max, masked edge."""
    t = pl.program_id(0)
    x = x_ref[...].astype(jnp.float32)
    col = lax.broadcasted_iota(jnp.int32, x.shape, 1) + t * tn
    valid = col < n_total
    tile_min = jnp.min(jnp.where(valid, x, jnp.inf), axis=1, keepdims=True)
    tile_max = jnp.max(jnp.where(valid, x, -jnp.inf), axis=1, keepdims=True)

    @pl.when(t == 0)
    def _():
        min_ref[...] = tile_min
        max_ref[...] = tile_max

    @pl.when(t > 0)
    def _():
        min_ref[...] = jnp.minimum(min_ref[...], tile_min)
        max_ref[...] = jnp.maximum(max_ref[...], tile_max)


def _apply_kernel(params_ref, x_ref, o_ref, *, qmax):
    """Pass B: elementwise fake-quant on a lane-dense tile; scalars from SMEM."""
    min_value = params_ref[0]
    scale = params_ref[1]
    x = x_ref[...].astype(jnp.float32)
    y = jnp.round(jnp.clip((x - min_value) / scale, 0.0, qmax))
    o_ref[...] = (y * scale + min_value).astype(o_ref.dtype)


# ---------------------------------------------------------------------------
# Tiling plans
# ---------------------------------------------------------------------------
def _fused_plan(B, N, itemsize, *, lane_cap, row_tile, target_bytes=_TARGET_TILE_BYTES):
    """Pick (C, G, R, tr, num_tiles) for the fused streaming path, or None."""
    sub = _sublane(itemsize)
    cands = []
    c = 128
    top = min(N, lane_cap)
    while c <= top:
        if N % c == 0:
            cands.append(c)
        c += 128
    C = None
    for cand in reversed(cands):               # widest lanes first (small stat scratch)
        if (B * (N // cand)) % sub == 0:
            C = cand
            break
    if C is None:
        return None
    G = N // C
    R = B * G
    if row_tile is not None:
        if row_tile % sub or R % row_tile:
            return None
        tr = row_tile
    else:
        cap_rows = max(sub, min(_round_down(R, sub),
                                _round_down(max(sub, target_bytes // (C * itemsize)),
                                            sub)))
        tr = sub
        t = sub
        while t <= cap_rows:
            if R % t == 0:
                tr = t
            t += sub
    return C, G, R, tr, R // tr


def _fused_fits(R, C, tr, itemsize, vmem_limit):
    out_res = 2 * R * C * itemsize            # resident output block (assume 2 buffers)
    in_tiles = 2 * tr * C * itemsize          # double-buffered input tiles
    stats = 2 * R * 128 * 4                   # (R, 1) f32 scratches, lane-padded to 128
    temps = 4 * tr * C * 4                    # f32 working set of one tile
    return out_res + in_tiles + stats + temps + (1 << 20) <= int(0.85 * vmem_limit)


# ---------------------------------------------------------------------------
# Wrapper
# ---------------------------------------------------------------------------
def quant_measure(x, num_bits=8, *, force_path=None, donate=False,
                  fused_lane_cap=_MAX_LANE_WIDTH, fused_row_tile=None):
    """Fake-quantize `x` (any shape with leading batch dim) like QuantMeasure.forward."""
    # TODO(synk): running_min / running_max EMA buffer updates are stateful
    # nn.Module side effects that do not change the returned tensor; not modeled.
    qmax = 2.0 ** num_bits - 1.0
    B = x.shape[0]
    total = x.size
    N = total // B
    itemsize = jnp.dtype(x.dtype).itemsize
    sub = _sublane(itemsize)
    vmem_limit = _vmem_limit_bytes()
    x2 = jnp.reshape(x, (B, N))

    # Path selection (account for sublane padding of small-B blocks).
    pad_rows = -(-B // 8) * 8
    resident_ok = total * pad_rows * (2 * itemsize + 12) <= (vmem_limit // 2) * B
    plan = _fused_plan(B, N, itemsize, lane_cap=fused_lane_cap, row_tile=fused_row_tile)
    fused_ok = (plan is not None and B <= 128
                and _fused_fits(plan[2], plan[0], plan[3], itemsize, vmem_limit))

    if force_path is None:
        path = "resident" if resident_ok else ("fused" if fused_ok else "two_pass")
    else:
        path = force_path
        if path == "fused" and not fused_ok:
            path = "two_pass"

    # ------------------------- VMEM-resident fast path -------------------------
    if path == "resident":
        out = pl.pallas_call(
            functools.partial(_resident_kernel, qmax=qmax),
            out_shape=jax.ShapeDtypeStruct((B, N), x.dtype),
            grid=(1,),
            in_specs=[pl.BlockSpec((B, N), lambda i: (0, 0))],
            out_specs=pl.BlockSpec((B, N), lambda i: (0, 0)),
            input_output_aliases=({0: 0} if donate else {}),
            compiler_params=_cparams(("arbitrary",), vmem_limit),
        )(x2)
        return jnp.reshape(out, x.shape)

    # ----------------- fused streaming path: 1 read + 1 write -----------------
    if path == "fused":
        C, G, R, tr, num_tiles = plan
        x_rc = jnp.reshape(x, (R, C))
        out = pl.pallas_call(
            functools.partial(_fused_kernel, qmax=qmax, batch=B, group=G,
                              num_tiles=num_tiles),
            out_shape=jax.ShapeDtypeStruct((R, C), x.dtype),
            grid=(num_tiles,),
            in_specs=[pl.BlockSpec((tr, C), lambda t: (t, 0))],
            out_specs=pl.BlockSpec((R, C), lambda t: (0, 0)),
            scratch_shapes=[pltpu.VMEM((R, 1), jnp.float32),
                            pltpu.VMEM((R, 1), jnp.float32)],
            input_output_aliases=({0: 0} if donate else {}),
            compiler_params=_cparams(("arbitrary",), vmem_limit),
        )(x_rc)
        return jnp.reshape(out, x.shape)

    # -------------------- two-pass path (large / odd shapes) -------------------
    # Pass A: per-sample min/max.
    C_a = _largest_lane_factor(N)
    if C_a is not None:
        G_a = N // C_a
        R_a = B * G_a
        if R_a >= sub:
            tr_a = max(sub, min(_round_down(R_a, sub),
                                _round_down(max(sub, _TARGET_TILE_BYTES //
                                                (C_a * itemsize)), sub)))
        else:
            tr_a = R_a
        x_a = jnp.reshape(x, (R_a, C_a))
        row_min, row_max = pl.pallas_call(
            _rowstat_kernel,
            out_shape=(jax.ShapeDtypeStruct((R_a, 1), jnp.float32),
                       jax.ShapeDtypeStruct((R_a, 1), jnp.float32)),
            grid=(pl.cdiv(R_a, tr_a),),
            in_specs=[pl.BlockSpec((tr_a, C_a), lambda t: (t, 0))],
            out_specs=(pl.BlockSpec((tr_a, 1), lambda t: (t, 0)),
                       pl.BlockSpec((tr_a, 1), lambda t: (t, 0))),
            compiler_params=_cparams(("parallel",), vmem_limit),
        )(x_a)
        per_min = jnp.min(jnp.reshape(row_min, (B, G_a)), axis=1)
        per_max = jnp.max(jnp.reshape(row_max, (B, G_a)), axis=1)
    else:
        tn = _TARGET_TILE_BYTES // max(1, pad_rows * itemsize)
        tn = max(128, min(_round_down(tn, 128), _round_down(N, 128))) if N >= 128 else N
        per_min, per_max = pl.pallas_call(
            functools.partial(_minmax_masked_kernel, tn=tn, n_total=N),
            out_shape=(jax.ShapeDtypeStruct((B, 1), jnp.float32),
                       jax.ShapeDtypeStruct((B, 1), jnp.float32)),
            grid=(pl.cdiv(N, tn),),
            in_specs=[pl.BlockSpec((B, tn), lambda t: (0, t))],
            out_specs=(pl.BlockSpec((B, 1), lambda t: (0, 0)),
                       pl.BlockSpec((B, 1), lambda t: (0, 0))),
            compiler_params=_cparams(("arbitrary",), vmem_limit),
        )(x2)
        per_min = per_min[:, 0]
        per_max = per_max[:, 0]

    # Tiny O(B) epilogue: batch-mean stats -> quant params for Pass B.
    min_value = jnp.mean(per_min)
    max_value = jnp.mean(per_max)
    scale = jnp.maximum((max_value - min_value) / qmax, 1e-8)
    params = jnp.stack([min_value, scale]).astype(jnp.float32)

    # Pass B: lane-dense elementwise fake-quant ("parallel" -> megacore-sharded).
    C_b = _largest_lane_factor(total)
    if C_b is not None:
        R_b = total // C_b
        x_b = jnp.reshape(x, (R_b, C_b))
        if R_b >= sub:
            tr_b = max(sub, min(_round_down(R_b, sub),
                                _round_down(max(sub, _TARGET_TILE_BYTES //
                                                (C_b * itemsize)), sub)))
        else:
            tr_b = R_b
        out = pl.pallas_call(
            functools.partial(_apply_kernel, qmax=qmax),
            out_shape=jax.ShapeDtypeStruct((R_b, C_b), x.dtype),
            grid=(pl.cdiv(R_b, tr_b),),
            in_specs=[pl.BlockSpec(memory_space=pltpu.MemorySpace.SMEM),
                      pl.BlockSpec((tr_b, C_b), lambda i: (i, 0))],
            out_specs=pl.BlockSpec((tr_b, C_b), lambda i: (i, 0)),
            input_output_aliases=({1: 0} if donate else {}),
            compiler_params=_cparams(("parallel",), vmem_limit),
        )(params, x_b)
    else:
        tc = _TARGET_TILE_BYTES // max(1, pad_rows * itemsize)
        tc = max(128, min(_round_down(tc, 128), _round_down(N, 128))) if N >= 128 else N
        out = pl.pallas_call(
            functools.partial(_apply_kernel, qmax=qmax),
            out_shape=jax.ShapeDtypeStruct((B, N), x.dtype),
            grid=(pl.cdiv(N, tc),),
            in_specs=[pl.BlockSpec(memory_space=pltpu.MemorySpace.SMEM),
                      pl.BlockSpec((B, tc), lambda i: (0, i))],
            out_specs=pl.BlockSpec((B, tc), lambda i: (0, i)),
            input_output_aliases=({1: 0} if donate else {}),
            compiler_params=_cparams(("parallel",), vmem_limit),
        )(params, x2)
    return jnp.reshape(out, x.shape)


# ---------------------------------------------------------------------------
# Pure-JAX reference + checks
# ---------------------------------------------------------------------------
def _quant_measure_ref(x, num_bits=8):
    """Mirror of the PyTorch forward (division formulation)."""
    B = x.shape[0]
    xf = jnp.reshape(x, (B, -1)).astype(jnp.float32)
    min_value = jnp.mean(jnp.min(xf, axis=1))
    max_value = jnp.mean(jnp.max(xf, axis=1))
    qmax = 2.0 ** num_bits - 1.0
    scale = jnp.maximum((max_value - min_value) / qmax, 1e-8)
    y = jnp.round(jnp.clip((xf - min_value) / scale, 0.0, qmax))
    return jnp.reshape(y * scale + min_value, x.shape), scale


def _check(out, x_in, tag):
    assert out.shape == x_in.shape and out.dtype == x_in.dtype, tag
    ref, scale = _quant_measure_ref(x_in)
    ref = ref.astype(x_in.dtype).astype(jnp.float32)      # match output precision
    scale = float(scale)
    diff = jnp.abs(out.astype(jnp.float32) - ref)
    max_diff = float(jnp.max(diff))
    # Rounding ties evaluated in the kernel vs the XLA reference may differ by at
    # most one quant step; never more.
    assert max_diff <= scale * 1.02 + 0.1, (tag, max_diff, scale)
    n_off = int(jnp.sum(diff > 0.5 * scale))
    assert n_off <= max(8, diff.size // 20), (tag, n_off)


if __name__ == "__main__":
    key = jax.random.PRNGKey(0)
    k1, k2, k3 = jax.random.split(key, 3)

    # Small NCHW activation: batch=2, channels=4, spatial=16x16 (f32).
    x_f32 = jax.random.normal(k1, (2, 4, 16, 16), dtype=jnp.float32) * 3.0 + 0.5
    # bf16 activation (native-dtype DMA path): batch=4, channels=16, spatial=16x16.
    x_bf16 = (jax.random.normal(k2, (4, 16, 16, 16), dtype=jnp.float32) * 2.0
              + 0.25).astype(jnp.bfloat16)
    # Non-128-divisible feature dim exercises the masked fallbacks.
    x_odd = jax.random.normal(k3, (2, 3, 10, 10), dtype=jnp.float32) * 1.5 - 0.2

    # 1) VMEM-resident fused fast path (f32).
    out = jax.block_until_ready(quant_measure(x_f32))
    _check(out, x_f32, "resident_f32")

    # 2) Fused streaming path, forced; a single row tile straddles both samples.
    out = jax.block_until_ready(
        quant_measure(x_f32, force_path="fused", fused_lane_cap=128, fused_row_tile=16))
    _check(out, x_f32, "fused_f32")

    # 3) Two-pass path, forced (row-reshaped Pass A + lane-dense Pass B), f32.
    out = jax.block_until_ready(quant_measure(x_f32, force_path="two_pass"))
    _check(out, x_f32, "two_pass_f32")

    # 4) Native-bf16 DMA, resident path.
    out = jax.block_until_ready(quant_measure(x_bf16))
    _check(out, x_bf16, "resident_bf16")

    # 5) Fused streaming path, bf16, multi-tile (8 grid steps, 16-row bf16 tiles).
    out = jax.block_until_ready(
        quant_measure(x_bf16, force_path="fused", fused_lane_cap=128, fused_row_tile=16))
    _check(out, x_bf16, "fused_bf16")

    # 6) Two-pass path, bf16.
    out = jax.block_until_ready(quant_measure(x_bf16, force_path="two_pass"))
    _check(out, x_bf16, "two_pass_bf16")

    # 7) Non-128-divisible N: masked Pass A fallback + column-tiled Pass B.
    out = jax.block_until_ready(quant_measure(x_odd, force_path="two_pass"))
    _check(out, x_odd, "two_pass_odd")

    print("KERNEL_OK")
</pallas_src>

<mosaic_0001>
module attributes {stable_mosaic.version = 11 : i64} {
  func.func @_resident_kernel(%arg0: i32, %arg1: memref<2x1024xf32, #tpu.memory_space<vmem>>, %arg2: memref<2x1024xf32, #tpu.memory_space<vmem>>) attributes {dimension_semantics = [#tpu.dimension_semantics<arbitrary>], iteration_bounds = array<i64: 1>, scalar_prefetch = 0 : i64, scratch_operands = 0 : i64, tpu.core_type = #tpu.core_type<tc>, window_params = [{pipeline_mode = #tpu.pipeline_mode<synchronous>, transform_indices = @transform_0, window_bounds = array<i64: 2, 1024>}, {pipeline_mode = #tpu.pipeline_mode<synchronous>, transform_indices = @transform_1, window_bounds = array<i64: 2, 1024>}]} {
    %c0 = arith.constant 0 : index
    %c0_0 = arith.constant 0 : index
    %0 = vector.load %arg1[%c0, %c0_0] : memref<2x1024xf32, #tpu.memory_space<vmem>>, vector<2x1024xf32>
    %cst = arith.constant dense<0x7F800000> : vector<2xf32>
    %1 = vector.multi_reduction <minimumf>, %0, %cst [1] : vector<2x1024xf32> to vector<2xf32>
    %2 = vector.shape_cast %1 : vector<2xf32> to vector<2x1xf32>
    %3 = vector.shape_cast %2 : vector<2x1xf32> to vector<1x2x1xf32>
    %cst_1 = arith.constant dense<0.000000e+00> : vector<1xf32>
    %4 = vector.multi_reduction <add>, %3, %cst_1 [1, 2] : vector<1x2x1xf32> to vector<1xf32>
    %5 = vector.shape_cast %4 : vector<1xf32> to vector<1x1x1xf32>
    %6 = vector.extract %5[0, 0, 0] : f32 from vector<1x1x1xf32>
    %cst_2 = arith.constant 2.000000e+00 : f32
    %7 = arith.divf %6, %cst_2 : f32
    %cst_3 = arith.constant dense<0xFF800000> : vector<2xf32>
    %8 = vector.multi_reduction <maximumf>, %0, %cst_3 [1] : vector<2x1024xf32> to vector<2xf32>
    %9 = vector.shape_cast %8 : vector<2xf32> to vector<2x1xf32>
    %10 = vector.shape_cast %9 : vector<2x1xf32> to vector<1x2x1xf32>
    %cst_4 = arith.constant dense<0.000000e+00> : vector<1xf32>
    %11 = vector.multi_reduction <add>, %10, %cst_4 [1, 2] : vector<1x2x1xf32> to vector<1xf32>
    %12 = vector.shape_cast %11 : vector<1xf32> to vector<1x1x1xf32>
    %13 = vector.extract %12[0, 0, 0] : f32 from vector<1x1x1xf32>
    %cst_5 = arith.constant 2.000000e+00 : f32
    %14 = arith.divf %13, %cst_5 : f32
    %15 = arith.subf %14, %7 : f32
    %cst_6 = arith.constant 2.550000e+02 : f32
    %16 = arith.divf %15, %cst_6 : f32
    %cst_7 = arith.constant 9.99999993E-9 : f32
    %17 = arith.maximumf %16, %cst_7 : f32
    %18 = vector.broadcast %7 : f32 to vector<2x1024xf32>
    %19 = arith.subf %0, %18 : vector<2x1024xf32>
    %20 = vector.broadcast %17 : f32 to vector<2x1024xf32>
    %21 = arith.divf %19, %20 : vector<2x1024xf32>
    %cst_8 = arith.constant 0.000000e+00 : f32
    %cst_9 = arith.constant 2.550000e+02 : f32
    %22 = vector.broadcast %cst_8 : f32 to vector<2x1024xf32>
    %23 = arith.maximumf %22, %21 : vector<2x1024xf32>
    %24 = vector.broadcast %cst_9 : f32 to vector<2x1024xf32>
    %25 = arith.minimumf %24, %23 : vector<2x1024xf32>
    %26 = math.roundeven %25 : vector<2x1024xf32>
    %27 = vector.broadcast %17 : f32 to vector<2x1024xf32>
    %28 = arith.mulf %26, %27 : vector<2x1024xf32>
    %29 = vector.broadcast %7 : f32 to vector<2x1024xf32>
    %30 = arith.addf %28, %29 : vector<2x1024xf32>
    %c0_10 = arith.constant 0 : index
    %c0_11 = arith.constant 0 : index
    %31 = vector.load %arg2[%c0_10, %c0_11] : memref<2x1024xf32, #tpu.memory_space<vmem>>, vector<2x1024xf32>
    tpu.vector_store %arg2[%c0_10, %c0_11], %30 {strides = array<i32>} : memref<2x1024xf32, #tpu.memory_space<vmem>>, vector<2x1024xf32>,
    return
  }
  func.func @transform_0(%arg0: i32) -> (i32, i32) {
    %c0_i32 = arith.constant 0 : i32
    %c0_i32_0 = arith.constant 0 : i32
    %c0_i32_1 = arith.constant 0 : i32
    return %c0_i32, %c0_i32_0 : i32, i32
  }
  func.func @transform_1(%arg0: i32) -> (i32, i32) {
    %c0_i32 = arith.constant 0 : i32
    %c0_i32_0 = arith.constant 0 : i32
    %c0_i32_1 = arith.constant 0 : i32
    return %c0_i32, %c0_i32_0 : i32, i32
  }
}

</mosaic_0001>

<llo_original>
// kernel: tpu_custom_call.1
$region0: #{tpu_custom_call.1}
  #allocation0 [shape = 'u32[]', space=smem, size = 0x4, offset = 0x4, fixed_abs, tag = 'smem constant byte address 0x4 - core index']
  #allocation1 [shape = 'u32[144,128]{1,0:T(1,128)}', space=vmem, size = 0x12000, scoped, tag = 'internal scratch']
  %s0 = inlined_call_operand.hbm [shape: f32[2,1024], index: 0, kind: input, shape index: {}]
  %s1 = inlined_call_operand.hbm [shape: f32[2,1024], index: 1, kind: output, shape index: {}]
  %s2 = sld [smem:[#allocation0]]
  $region18: #{tpu_custom_call.1} parent=0
    _
  %s4 = ssub.s32 1, %s2
  %s5 = scalar_select 0, %s4, %s2
  $region1: #{tpu_custom_call.1} parent=0
    #allocation2 [shape = 'u8[8192]{0}', space=vmem, size = 0x2000, scoped, tag = 'input window, operand 0, single buffered']
    #allocation3 [shape = 's32[1]{0}', space=sflag, size = 0x4, scoped, tag = 'scoped memory for tpu_custom_call.1']
    #allocation4 [shape = 's32[1]{0}', space=sflag, size = 0x4, scoped, tag = 'scoped memory for tpu_custom_call.1']
    #allocation5 [shape = 'u8[8192]{0}', space=vmem, size = 0x2000, scoped, tag = 'output window, operand 0, single buffered']
    %6 = vsyncpa [#allocation3], 0
    %7 = vsyncpa [#allocation4], 0
    // Predicated region
    $region2: #{tpu_custom_call.1} parent=1 // pred_check
      _
    $region3: #{tpu_custom_call.1} parent=1 // pred_check_branch
      %9 = sbr.rel (0) target = $region5
    $region4: #{tpu_custom_call.1} parent=1 // pred_region
      %s11 = ssub.s32 256, 256
      %12 = vsyncadd [#allocation3], %s11
      %s14 = sshll.u32 [#allocation2], 4
      %s15 = int_to_ptr.vmem [resolvable:$true] %s14
      %17 = dma.hbm_to_vmem [thread:$0]  %s0, 256, %s15, [#allocation3]
    $region5: #{tpu_custom_call.1} parent=1 // pred_fallthru
      _
    // Predicated region
    $region6: #{tpu_custom_call.1} parent=1 // pred_check
      _
    $region7: #{tpu_custom_call.1} parent=1 // pred_check_branch
      %19 = sbr.rel (0) target = $region9
    $region8: #{tpu_custom_call.1} parent=1 // pred_region
      %20 = dma.done [#allocation3], 256
    $region9: #{tpu_custom_call.1} parent=1 // pred_fallthru
      _
    %v21 = vld [vmem:[#allocation2] sm:$0xff]
    %v22 = vld [vmem:[#allocation2 + $0x8] sm:$0xff]
    %v25 = vcombine.high %v21, %v21
    %v27 = vunpack.c.l.s4 1983009808
    %v28 = vunpack.c.0.s8 %v27
    %v29 = vlaneseq
    %v30 = vshrl.u32 %v29, 7
    %v31 = vsub.s32 %v28, %v30
    %v32 = vrot.slane %v21, %v31
    %v34 = vunpack.c.l.s4 1983009808
    %v35 = vunpack.c.0.s8 %v34
    %v36 = vlaneseq
    %v37 = vshrl.u32 %v36, 7
    %v38 = vsub.s32 %v35, %v37
    %v39 = vrot.slane %v25, %v38
    %v40 = vcombine.high %v32, %v32
    %v41 = vcombine.high %v39, %v39
    %v42 = vcombine.high %v22, %v22
    %v44 = vunpack.c.l.s4 1983009808
    %v45 = vunpack.c.0.s8 %v44
    %v46 = vlaneseq
    %v47 = vshrl.u32 %v46, 7
    %v48 = vsub.s32 %v45, %v47
    %v49 = vrot.slane %v22, %v48
    %v51 = vunpack.c.l.s4 1983009808
    %v52 = vunpack.c.0.s8 %v51
    %v53 = vlaneseq
    %v54 = vshrl.u32 %v53, 7
    %v55 = vsub.s32 %v52, %v54
    %v56 = vrot.slane %v42, %v55
    %v57 = vcombine.high %v49, %v49
    %v58 = vcombine.high %v56, %v56
    %vm67 = vcmask 1041408
    %v68 = vsel %vm67, %v32, inf
    %v69 = vsel %vm67, %v40, inf
    %v70 = vsel %vm67, %v39, inf
    %v71 = vsel %vm67, %v41, inf
    %v72 = vsel %vm67, %v49, inf
    %v73 = vmin.f32 %v68, %v72
    %v74 = vsel %vm67, %v57, inf
    %v75 = vmin.f32 %v69, %v74
    %v76 = vsel %vm67, %v56, inf
    %v77 = vmin.f32 %v70, %v76
    %v78 = vsel %vm67, %v58, inf
    %v79 = vmin.f32 %v71, %v78
    %v80 = vmin.f32 %v73, %v75
    %v81 = vmin.f32 %v77, %v79
    %v82 = vmin.f32 %v80, %v81
    %83 = vmin.xlane.f32.xlu0 %v82
    %v84 = vpop.xlane.xlu0 %83
    %vm85 = vcmask 1024
    %v86 = vsel %vm85, %v84, 0.0
    %87 = vadd.xlane.f32.xlu0 %v86
    %v88 = vpop.xlane.xlu0 %87
    %v89 = vrot.slane %v88, 4
    %v90 = vadd.f32 %v88, %v89
    %v91 = vrot.slane %v90, 2
    %v92 = vadd.f32 %v90, %v91
    %v93 = vrot.slane %v92, 1
    %v94 = vadd.f32 %v92, %v93
    %s95 = vtos %v94
    %v96 = vrcp.pop 2.0
    %s97 = vtos %v96
    %s98 = smul.f32 %s95, %s97
    %v99 = vsel %vm67, %v32, -inf
    %v100 = vsel %vm67, %v40, -inf
    %v101 = vsel %vm67, %v39, -inf
    %v102 = vsel %vm67, %v41, -inf
    %v103 = vsel %vm67, %v49, -inf
    %v104 = vmax.f32 %v99, %v103
    %v105 = vsel %vm67, %v57, -inf
    %v106 = vmax.f32 %v100, %v105
    %v107 = vsel %vm67, %v56, -inf
    %v108 = vmax.f32 %v101, %v107
    %v109 = vsel %vm67, %v58, -inf
    %v110 = vmax.f32 %v102, %v109
    %v111 = vmax.f32 %v104, %v106
    %v112 = vmax.f32 %v108, %v110
    %v113 = vmax.f32 %v111, %v112
    %114 = vmax.xlane.f32.xlu0 %v113
    %v115 = vpop.xlane.xlu0 %114
    %v116 = vsel %vm85, %v115, 0.0
    %117 = vadd.xlane.f32.xlu0 %v116
    %v118 = vpop.xlane.xlu0 %117
    %v119 = vrot.slane %v118, 4
    %v120 = vadd.f32 %v118, %v119
    %v121 = vrot.slane %v120, 2
    %v122 = vadd.f32 %v120, %v121
    %v123 = vrot.slane %v122, 1
    %v124 = vadd.f32 %v122, %v123
    %s125 = vtos %v124
    %v126 = vrcp.pop 2.0
    %s127 = vtos %v126
    %s128 = smul.f32 %s125, %s127
    %s129 = ssub.f32 %s128, %s98
    %v130 = vrcp.pop 255.0
    %s131 = vtos %v130
    %s132 = smul.f32 %s129, %s131
    %s133 = smax.f32 %s132, 1e-08
    %v134 = vstv %s98
    %v135 = vsub.f32 %v21, %v134
    %v136 = vsub.f32 %v22, %v134
    %v137 = vstv %s133
    %v138 = vrcp.pop %v137
    %v139 = vmul.f32 %v135, %v138
    %v140 = vmul.f32 %v136, %v138
    %v141 = vmax.f32 %v139, 0.0
    %v142 = vmax.f32 %v140, 0.0
    %v143 = vmin.f32 %v141, 255.0
    %v144 = vmin.f32 %v142, 255.0
    %v145 = vround.ne.pseudo %v143
    %v146 = vround.ne.pseudo %v144
    %v147 = vmul.f32 %v145, %v137
    %v148 = vmul.f32 %v146, %v137
    %v149 = vadd.f32 %v147, %v134
    %v150 = vadd.f32 %v148, %v134
    %151 = vst [vmem:[#allocation5] sm:$0xff] %v149
    %152 = vst [vmem:[#allocation5 + $0x8] sm:$0xff] %v150
    // Predicated region
    $region10: #{tpu_custom_call.1} parent=1 // pred_check
      _
    $region11: #{tpu_custom_call.1} parent=1 // pred_check_branch
      %154 = sbr.rel (0) target = $region13
    $region12: #{tpu_custom_call.1} parent=1 // pred_region
      %s156 = ssub.s32 256, 256
      %157 = vsyncadd [#allocation4], %s156
      %s159 = sshll.u32 [#allocation5], 4
      %s160 = int_to_ptr.vmem [resolvable:$true] %s159
      %162 = dma.vmem_to_hbm [thread:$0]  %s160, 256, %s1, [#allocation4]
    $region13: #{tpu_custom_call.1} parent=1 // pred_fallthru
      _
    // Predicated region
    $region14: #{tpu_custom_call.1} parent=1 // pred_check
      _
    $region15: #{tpu_custom_call.1} parent=1 // pred_check_branch
      %164 = sbr.rel (0) target = $region17
    $region16: #{tpu_custom_call.1} parent=1 // pred_region
      %165 = dma.done [#allocation4], 256
    $region17: #{tpu_custom_call.1} parent=1 // pred_fallthru
      _
    %166 = vsyncpa [#allocation3], 1
    %167 = vsyncpa [#allocation4], 1

</llo_original>
